<compile_context>
chip_gen: v7x
topology: tpu7x:2x2x1
jax: 0.10.0
libtpu: 0.0.40
codegen_flags: <defaults>
</compile_context>

<pallas_src>
import jax
import jax.numpy as jnp
from jax.experimental import pallas as pl
from jax.experimental.pallas import tpu as pltpu

LABELS = ['toxic', 'severe_toxic', 'obscene', 'threat', 'insult', 'identity_hate']
NUM_LABELS = len(LABELS)
KERNEL_DIMS = (2, 3, 4)
KMAX = max(KERNEL_DIMS)
KERNEL_COUNT = 3            # out_channels per kernel size, as in the PyTorch module
LANE = 128
SUBLANE = 8
NEG_MASK = -1e30            # additive mask value; ReLU clamps it to 0 (exact)


def _round_up(v, m):
    return (v + m - 1) // m * m


def _device_defaults():
    """Per-generation tiling / dtype defaults (all overridable via kwargs)."""
    try:
        kind = jax.devices()[0].device_kind.lower()
    except Exception:       # no backend visible at trace time -> be conservative
        kind = ""
    if "v7" in kind or "7x" in kind:
        # 64 MiB physical VMEM, 2 TensorCores -> keep >= 2 grid steps.
        return dict(vmem_budget=28 << 20, vmem_limit=48 << 20,
                    min_grid_steps=2, epilogue_dtype=jnp.bfloat16)
    if "v6" in kind:
        return dict(vmem_budget=48 << 20, vmem_limit=96 << 20,
                    min_grid_steps=1, epilogue_dtype=jnp.bfloat16)
    if any(g in kind for g in ("v2", "v3", "v4", "v5")):
        # 128 MiB VMEM but no bf16 VALU on v5e -> f32 epilogue.
        return dict(vmem_budget=48 << 20, vmem_limit=96 << 20,
                    min_grid_steps=1, epilogue_dtype=jnp.float32)
    return dict(vmem_budget=16 << 20, vmem_limit=32 << 20,
                min_grid_steps=1, epilogue_dtype=jnp.float32)


def _make_kernel(tb, s_pad, emb_dim, cp, ep_dtype):
    rows = tb * s_pad

    def kernel(x_ref, w_ref, plane_ref, wc_ref, bc_ref, out_ref, xw_ref):
        # x_ref    : (tb*s_pad, E)      f32  flattened (batch, seq) rows of this tile
        # w_ref    : (KMAX*E, cp)       bf16 packed conv weights (zero rows for taps >= k)
        # plane_ref: (s_pad, cp)        ep   conv bias + position-validity mask plane
        # wc_ref   : (cp, npad)         f32  classifier weight, pre-transposed
        # bc_ref   : (1, npad)          f32  classifier bias
        # out_ref  : (tb, npad)         bf16 lane-dense output tile
        # xw_ref   : (tb*s_pad, KMAX*E) bf16 im2col scratch

        # The tail rows of stripes i >= 1 are never written below; they only feed
        # masked positions, but must be finite (scratch may hold junk on step 0).
        xw_ref[pl.ds(rows - SUBLANE, SUBLANE), :] = jnp.zeros(
            (SUBLANE, KMAX * emb_dim), jnp.bfloat16)

        # im2col stripes straight off the x ref: stripe i holds x shifted up by i
        # rows (offset reads, bf16 cast at the store; no f32 copies, no concat).
        # Rows leaking across batch elements / into sequence padding only ever
        # reach positions the additive mask plane drives below zero before ReLU.
        xw_ref[:, 0:emb_dim] = x_ref[...].astype(jnp.bfloat16)
        for i in range(1, KMAX):
            xw_ref[pl.ds(0, rows - i), i * emb_dim:(i + 1) * emb_dim] = (
                x_ref[pl.ds(i, rows - i), :].astype(jnp.bfloat16))

        # Single MXU push: (rows, KMAX*E=128) x (KMAX*E, cp=128), f32 accumulation.
        acc = jnp.dot(xw_ref[...], w_ref[...], preferred_element_type=jnp.float32)

        # Epilogue: bias + validity mask folded into one additive plane, ReLU,
        # max-pool over the sequence.  ep_dtype = bf16 on v6e/v7x, f32 on v5e.
        conv = acc.astype(ep_dtype).reshape(tb, s_pad, cp) + plane_ref[...][None]
        pooled = jnp.max(jnp.maximum(conv, 0), axis=1)               # (tb, cp)

        # TODO(synk): nn.Dropout is identity at inference time; no stochastic mask.
        logits = jnp.dot(pooled.astype(jnp.float32), wc_ref[...],
                         preferred_element_type=jnp.float32) + bc_ref[...]
        out_ref[...] = jax.nn.sigmoid(logits).astype(out_ref.dtype)  # lane-dense store

    return kernel


def pack_params(params, emb_dim):
    """Pack PyTorch-layout params into lane-dense, pre-transposed kernel operands."""
    w2, b2, w3, b3, w4, b4, wc, bc = params
    c = KERNEL_COUNT
    feat = len(KERNEL_DIMS) * c
    cp = _round_up(feat, LANE)          # conv channels padded to 128 lanes
    npad = _round_up(NUM_LABELS, LANE)  # labels padded to 128 lanes

    w_packed = jnp.zeros((KMAX * emb_dim, cp), jnp.float32)
    b_packed = jnp.zeros((1, cp), jnp.float32)
    for g, ((w, b), k) in enumerate(zip(((w2, b2), (w3, b3), (w4, b4)), KERNEL_DIMS)):
        # w: (C, k, E) -> rows i*E+e, cols g*C+c hold w[c, i, e]; taps i >= k stay 0.
        wt = jnp.transpose(w, (1, 2, 0)).reshape(k * emb_dim, c)
        w_packed = w_packed.at[:k * emb_dim, g * c:(g + 1) * c].set(wt)
        b_packed = b_packed.at[0, g * c:(g + 1) * c].set(b.reshape(-1))

    # Classifier stays f32: tiny matmul, keeps sigmoid inputs accurate.
    wc_packed = jnp.zeros((cp, npad), jnp.float32).at[:feat, :NUM_LABELS].set(wc.T)
    bc_packed = jnp.zeros((1, npad), jnp.float32).at[0, :NUM_LABELS].set(bc.reshape(-1))
    return w_packed.astype(jnp.bfloat16), b_packed, wc_packed, bc_packed


def _build_bias_plane(b_packed, seq_len, s_pad, cp, ep_dtype):
    """plane[t, c] = conv bias for valid positions, NEG_MASK elsewhere.

    ReLU(x + NEG_MASK) == 0, so pooling over the masked plane is exact (the true
    pooled max of ReLU outputs is >= 0).  Padding channels are masked everywhere
    -> pooled 0 -> they hit zero classifier columns.
    """
    plane = jnp.broadcast_to(b_packed, (s_pad, cp))
    t_idx = jnp.arange(s_pad)[:, None]
    c_idx = jnp.arange(cp)[None, :]
    valid = jnp.zeros((s_pad, cp), bool)
    for g, k in enumerate(KERNEL_DIMS):
        grp = (c_idx >= g * KERNEL_COUNT) & (c_idx < (g + 1) * KERNEL_COUNT)
        valid = valid | (grp & (t_idx < seq_len - k + 1))
    return jnp.where(valid, plane, NEG_MASK).astype(ep_dtype)


def kim_cnn_forward(x, params, *, block_b=None, vmem_budget=None,
                    vmem_limit_bytes=None, epilogue_dtype=None):
    B, S, E = x.shape
    assert S >= KMAX, "sequence must be at least as long as the largest conv kernel"
    feat = len(KERNEL_DIMS) * KERNEL_COUNT
    cp = _round_up(feat, LANE)
    npad = _round_up(NUM_LABELS, LANE)
    s_pad = _round_up(S, SUBLANE)

    dflt = _device_defaults()
    vmem_budget = dflt["vmem_budget"] if vmem_budget is None else vmem_budget
    vmem_limit_bytes = dflt["vmem_limit"] if vmem_limit_bytes is None else vmem_limit_bytes
    epilogue_dtype = dflt["epilogue_dtype"] if epilogue_dtype is None else epilogue_dtype
    min_grid_steps = dflt["min_grid_steps"]
    ep_size = jnp.dtype(epilogue_dtype).itemsize

    if block_b is None:
        # Per-(batch, position)-row VMEM footprint after the refactor.
        per_row = (2 * 4 * E        # double-buffered f32 input rows
                   + 2 * 2 * E      # bf16 stripe-cast temporaries
                   + 2 * KMAX * E   # bf16 im2col scratch
                   + 4 * cp         # f32 MXU accumulator
                   + ep_size * cp)  # epilogue intermediate
        block_b = max(SUBLANE, vmem_budget // max(1, per_row * s_pad))
        if min_grid_steps > 1:
            # v7x: keep >= min_grid_steps grid steps so both TensorCores get work.
            block_b = min(block_b,
                          max(SUBLANE, (B + min_grid_steps - 1) // min_grid_steps))
    tb = min(_round_up(B, SUBLANE), _round_up(block_b, SUBLANE))
    b_pad = _round_up(B, tb)

    # x reaches the kernel as 32-bit rows: directly (zero extra HBM passes) when no
    # padding is needed, otherwise via one fused f32 pad.  Keeping the shifted
    # im2col reads on 32-bit data avoids packed-dtype sublane-offset relayouts;
    # the bf16 cast for the MXU happens at the stripe store inside the kernel.
    x32 = x.astype(jnp.float32)
    if b_pad == B and s_pad == S:
        x2d = x32.reshape(B * S, E)
    else:
        x2d = (jnp.zeros((b_pad, s_pad, E), jnp.float32)
               .at[:B, :S, :].set(x32)
               .reshape(b_pad * s_pad, E))

    w_packed, b_packed, wc_packed, bc_packed = pack_params(params, E)
    plane = _build_bias_plane(b_packed, S, s_pad, cp, epilogue_dtype)

    kernel = _make_kernel(tb, s_pad, E, cp, epilogue_dtype)

    rows_total = b_pad * s_pad
    cost = pl.CostEstimate(
        flops=2 * rows_total * (KMAX * E) * cp + 2 * b_pad * cp * npad,
        transcendentals=b_pad * npad,
        bytes_accessed=(x2d.size * 4 + w_packed.size * 2 + wc_packed.size * 4
                        + plane.size * ep_size + b_pad * npad * 2),
    )

    out = pl.pallas_call(
        kernel,
        out_shape=jax.ShapeDtypeStruct((b_pad, npad), jnp.bfloat16),
        grid=(b_pad // tb,),
        in_specs=[
            pl.BlockSpec((tb * s_pad, E), lambda i: (i, 0)),   # x rows for this batch tile
            pl.BlockSpec((KMAX * E, cp), lambda i: (0, 0)),    # packed conv weight
            pl.BlockSpec((s_pad, cp), lambda i: (0, 0)),       # bias + validity plane
            pl.BlockSpec((cp, npad), lambda i: (0, 0)),        # classifier weight
            pl.BlockSpec((1, npad), lambda i: (0, 0)),         # classifier bias
        ],
        out_specs=pl.BlockSpec((tb, npad), lambda i: (i, 0)),
        scratch_shapes=[pltpu.VMEM((tb * s_pad, KMAX * E), jnp.bfloat16)],
        compiler_params=pltpu.CompilerParams(
            dimension_semantics=("parallel",),
            vmem_limit_bytes=vmem_limit_bytes,
        ),
        cost_estimate=cost,
    )(x2d, w_packed, plane, wc_packed, bc_packed)
    return out[:B, :NUM_LABELS].astype(jnp.float32)


def kim_cnn_reference(x, params):
    """Pure-JAX float32 reference matching the PyTorch forward in eval mode."""
    w2, b2, w3, b3, w4, b4, wc, bc = params
    pooled = []
    for w, b, k in ((w2, b2, 2), (w3, b3, 3), (w4, b4, 4)):
        L = x.shape[1] - k + 1
        conv = sum(jnp.einsum('ble,ce->blc', x[:, i:i + L, :], w[:, i, :])
                   for i in range(k))
        conv = jax.nn.relu(conv + b.reshape(1, 1, -1))
        pooled.append(conv.max(axis=1))
    feats = jnp.concatenate(pooled, axis=1)
    return jax.nn.sigmoid(feats @ wc.T + bc)


def init_params(key, emb_dim):
    ks = jax.random.split(key, 8)
    scale = 0.1
    c = KERNEL_COUNT
    w2 = scale * jax.random.normal(ks[0], (c, 2, emb_dim), jnp.float32)
    b2 = scale * jax.random.normal(ks[1], (1, c), jnp.float32)
    w3 = scale * jax.random.normal(ks[2], (c, 3, emb_dim), jnp.float32)
    b3 = scale * jax.random.normal(ks[3], (1, c), jnp.float32)
    w4 = scale * jax.random.normal(ks[4], (c, 4, emb_dim), jnp.float32)
    b4 = scale * jax.random.normal(ks[5], (1, c), jnp.float32)
    wc = scale * jax.random.normal(ks[6], (NUM_LABELS, len(KERNEL_DIMS) * c), jnp.float32)
    bc = scale * jax.random.normal(ks[7], (1, NUM_LABELS), jnp.float32)
    return (w2, b2, w3, b3, w4, b4, wc, bc)


if __name__ == "__main__":
    B, S, E = 2, 16, 32   # batch, seq_len, embedding_dim (input is already embedded)
    key = jax.random.PRNGKey(0)
    kx, kp = jax.random.split(key)
    x = jax.random.normal(kx, (B, S, E), jnp.float32)
    params = init_params(kp, E)

    fwd = jax.jit(kim_cnn_forward)   # fuses the host-side pad / param packing passes
    out = jax.block_until_ready(fwd(x, params))
    ref = kim_cnn_reference(x, params)

    assert out.shape == (B, NUM_LABELS)
    # bf16 conv-matmul inputs / epilogue / output store -> looser tolerance than f32 ref.
    assert jnp.allclose(out, ref, atol=1e-2, rtol=1e-2), (out, ref)
    print("KERNEL_OK")
</pallas_src>

<mosaic_0001>
module attributes {stable_mosaic.version = 11 : i64} {
  func.func @kernel(%arg0: i32, %arg1: memref<128x32xf32, #tpu.memory_space<vmem>>, %arg2: memref<128x128xbf16, #tpu.memory_space<vmem>>, %arg3: memref<16x128xf32, #tpu.memory_space<vmem>>, %arg4: memref<128x128xf32, #tpu.memory_space<vmem>>, %arg5: memref<1x128xf32, #tpu.memory_space<vmem>>, %arg6: memref<8x128xbf16, #tpu.memory_space<vmem>>, %arg7: memref<128x128xbf16, #tpu.memory_space<vmem>>) attributes {dimension_semantics = [#tpu.dimension_semantics<parallel>], iteration_bounds = array<i64: 1>, scalar_prefetch = 0 : i64, scratch_operands = 1 : i64, tpu.core_type = #tpu.core_type<tc>, window_params = [{transform_indices = @transform_0, window_bounds = array<i64: 128, 32>}, {pipeline_mode = #tpu.pipeline_mode<synchronous>, transform_indices = @transform_1, window_bounds = array<i64: 128, 128>}, {pipeline_mode = #tpu.pipeline_mode<synchronous>, transform_indices = @transform_2, window_bounds = array<i64: 16, 128>}, {pipeline_mode = #tpu.pipeline_mode<synchronous>, transform_indices = @transform_3, window_bounds = array<i64: 128, 128>}, {pipeline_mode = #tpu.pipeline_mode<synchronous>, transform_indices = @transform_4, window_bounds = array<i64: 1, 128>}, {transform_indices = @transform_5, window_bounds = array<i64: 8, 128>}]} {
    %cst = arith.constant 0.000000e+00 : bf16
    %0 = vector.broadcast %cst : bf16 to vector<8x128xbf16>
    %c120 = arith.constant 120 : index
    %c0 = arith.constant 0 : index
    %1 = vector.load %arg7[%c120, %c0] : memref<128x128xbf16, #tpu.memory_space<vmem>>, vector<8x128xbf16>
    tpu.vector_store %arg7[%c120, %c0], %0 {strides = array<i32>} : memref<128x128xbf16, #tpu.memory_space<vmem>>, vector<8x128xbf16>,
    %c0_0 = arith.constant 0 : index
    %c0_1 = arith.constant 0 : index
    %2 = vector.load %arg1[%c0_0, %c0_1] : memref<128x32xf32, #tpu.memory_space<vmem>>, vector<128x32xf32>
    %3 = arith.truncf %2 : vector<128x32xf32> to vector<128x32xbf16>
    %c0_2 = arith.constant 0 : index
    %c0_3 = arith.constant 0 : index
    %4 = vector.load %arg7[%c0_2, %c0_3] : memref<128x128xbf16, #tpu.memory_space<vmem>>, vector<128x32xbf16>
    tpu.vector_store %arg7[%c0_2, %c0_3], %3 {strides = array<i32>} : memref<128x128xbf16, #tpu.memory_space<vmem>>, vector<128x32xbf16>,
    %c1 = arith.constant 1 : index
    %c0_4 = arith.constant 0 : index
    %5 = vector.load %arg1[%c1, %c0_4] : memref<128x32xf32, #tpu.memory_space<vmem>>, vector<127x32xf32>
    %6 = arith.truncf %5 : vector<127x32xf32> to vector<127x32xbf16>
    %c0_5 = arith.constant 0 : index
    %c32 = arith.constant 32 : index
    %7 = vector.load %arg7[%c0_5, %c32] : memref<128x128xbf16, #tpu.memory_space<vmem>>, vector<127x32xbf16>
    tpu.vector_store %arg7[%c0_5, %c32], %6 {strides = array<i32>} : memref<128x128xbf16, #tpu.memory_space<vmem>>, vector<127x32xbf16>,
    %c2 = arith.constant 2 : index
    %c0_6 = arith.constant 0 : index
    %8 = vector.load %arg1[%c2, %c0_6] : memref<128x32xf32, #tpu.memory_space<vmem>>, vector<126x32xf32>
    %9 = arith.truncf %8 : vector<126x32xf32> to vector<126x32xbf16>
    %c0_7 = arith.constant 0 : index
    %c64 = arith.constant 64 : index
    %10 = vector.load %arg7[%c0_7, %c64] : memref<128x128xbf16, #tpu.memory_space<vmem>>, vector<126x32xbf16>
    tpu.vector_store %arg7[%c0_7, %c64], %9 {strides = array<i32>} : memref<128x128xbf16, #tpu.memory_space<vmem>>, vector<126x32xbf16>,
    %c3 = arith.constant 3 : index
    %c0_8 = arith.constant 0 : index
    %11 = vector.load %arg1[%c3, %c0_8] : memref<128x32xf32, #tpu.memory_space<vmem>>, vector<125x32xf32>
    %12 = arith.truncf %11 : vector<125x32xf32> to vector<125x32xbf16>
    %c0_9 = arith.constant 0 : index
    %c96 = arith.constant 96 : index
    %13 = vector.load %arg7[%c0_9, %c96] : memref<128x128xbf16, #tpu.memory_space<vmem>>, vector<125x32xbf16>
    tpu.vector_store %arg7[%c0_9, %c96], %12 {strides = array<i32>} : memref<128x128xbf16, #tpu.memory_space<vmem>>, vector<125x32xbf16>,
    %c0_10 = arith.constant 0 : index
    %c0_11 = arith.constant 0 : index
    %14 = vector.load %arg7[%c0_10, %c0_11] : memref<128x128xbf16, #tpu.memory_space<vmem>>, vector<128x128xbf16>
    %c0_12 = arith.constant 0 : index
    %c0_13 = arith.constant 0 : index
    %15 = vector.load %arg2[%c0_12, %c0_13] : memref<128x128xbf16, #tpu.memory_space<vmem>>, vector<128x128xbf16>
    %cst_14 = arith.constant dense<0.000000e+00> : vector<128x128xf32>
    %16 = tpu.matmul %14, %15, %cst_14 {dimension_numbers = #tpu.dot_dimension_numbers<[1], [0], [0], [1], [0, 0, 1, 1], [], []>} : vector<128x128xbf16>, vector<128x128xbf16>, vector<128x128xf32> -> vector<128x128xf32>
    %17 = vector.shape_cast %16 : vector<128x128xf32> to vector<8x16x128xf32>
    %c0_15 = arith.constant 0 : index
    %c0_16 = arith.constant 0 : index
    %18 = vector.load %arg3[%c0_15, %c0_16] : memref<16x128xf32, #tpu.memory_space<vmem>>, vector<16x128xf32>
    %19 = vector.shape_cast %18 : vector<16x128xf32> to vector<1x16x128xf32>
    %20 = vector.broadcast %19 : vector<1x16x128xf32> to vector<8x16x128xf32>
    %21 = arith.addf %17, %20 : vector<8x16x128xf32>
    %cst_17 = arith.constant 0.000000e+00 : f32
    %22 = vector.broadcast %cst_17 : f32 to vector<8x16x128xf32>
    %23 = arith.maximumf %21, %22 : vector<8x16x128xf32>
    %cst_18 = arith.constant dense<0xFF800000> : vector<8x128xf32>
    %24 = vector.multi_reduction <maximumf>, %23, %cst_18 [1] : vector<8x16x128xf32> to vector<8x128xf32>
    %c0_19 = arith.constant 0 : index
    %c0_20 = arith.constant 0 : index
    %25 = vector.load %arg4[%c0_19, %c0_20] : memref<128x128xf32, #tpu.memory_space<vmem>>, vector<128x128xf32>
    %cst_21 = arith.constant dense<0.000000e+00> : vector<8x128xf32>
    %26 = tpu.matmul %24, %25, %cst_21 {dimension_numbers = #tpu.dot_dimension_numbers<[1], [0], [0], [1], [0, 0, 1, 1], [], []>} : vector<8x128xf32>, vector<128x128xf32>, vector<8x128xf32> -> vector<8x128xf32>
    %c0_22 = arith.constant 0 : index
    %c0_23 = arith.constant 0 : index
    %27 = vector.load %arg5[%c0_22, %c0_23] : memref<1x128xf32, #tpu.memory_space<vmem>>, vector<1x128xf32>
    %28 = vector.broadcast %27 : vector<1x128xf32> to vector<8x128xf32>
    %29 = arith.addf %26, %28 : vector<8x128xf32>
    %30 = arith.negf %29 : vector<8x128xf32>
    %31 = math.exp %30 : vector<8x128xf32>
    %cst_24 = arith.constant 1.000000e+00 : f32
    %32 = vector.broadcast %cst_24 : f32 to vector<8x128xf32>
    %33 = arith.addf %32, %31 : vector<8x128xf32>
    %34 = arith.divf %32, %33 : vector<8x128xf32>
    %35 = arith.truncf %34 : vector<8x128xf32> to vector<8x128xbf16>
    %c0_25 = arith.constant 0 : index
    %c0_26 = arith.constant 0 : index
    %36 = vector.load %arg6[%c0_25, %c0_26] : memref<8x128xbf16, #tpu.memory_space<vmem>>, vector<8x128xbf16>
    tpu.vector_store %arg6[%c0_25, %c0_26], %35 {strides = array<i32>} : memref<8x128xbf16, #tpu.memory_space<vmem>>, vector<8x128xbf16>,
    return
  }
  func.func @transform_0(%arg0: i32) -> (i32, i32) {
    %c0_i32 = arith.constant 0 : i32
    %c0_i32_0 = arith.constant 0 : i32
    return %arg0, %c0_i32 : i32, i32
  }
  func.func @transform_1(%arg0: i32) -> (i32, i32) {
    %c0_i32 = arith.constant 0 : i32
    %c0_i32_0 = arith.constant 0 : i32
    %c0_i32_1 = arith.constant 0 : i32
    return %c0_i32, %c0_i32_0 : i32, i32
  }
  func.func @transform_2(%arg0: i32) -> (i32, i32) {
    %c0_i32 = arith.constant 0 : i32
    %c0_i32_0 = arith.constant 0 : i32
    %c0_i32_1 = arith.constant 0 : i32
    return %c0_i32, %c0_i32_0 : i32, i32
  }
  func.func @transform_3(%arg0: i32) -> (i32, i32) {
    %c0_i32 = arith.constant 0 : i32
    %c0_i32_0 = arith.constant 0 : i32
    %c0_i32_1 = arith.constant 0 : i32
    return %c0_i32, %c0_i32_0 : i32, i32
  }
  func.func @transform_4(%arg0: i32) -> (i32, i32) {
    %c0_i32 = arith.constant 0 : i32
    %c0_i32_0 = arith.constant 0 : i32
    %c0_i32_1 = arith.constant 0 : i32
    return %c0_i32, %c0_i32_0 : i32, i32
  }
  func.func @transform_5(%arg0: i32) -> (i32, i32) {
    %c0_i32 = arith.constant 0 : i32
    %c0_i32_0 = arith.constant 0 : i32
    return %arg0, %c0_i32 : i32, i32
  }
}

</mosaic_0001>

<llo_original>
// kernel: kim_cnn_forward.1
$region0: #{kim_cnn_forward.1}
  #allocation0 [shape = 'u32[]', space=smem, size = 0x4, offset = 0x4, fixed_abs, tag = 'smem constant byte address 0x4 - core index']
  #allocation1 [shape = 'u32[144,128]{1,0:T(1,128)}', space=vmem, size = 0x12000, scoped, tag = 'internal scratch']
  #allocation2 [shape = 'bf16[128,128]{1,0:T(16,128)(2,1)}', space=vmem, size = 0x8000, scoped, tag = 'scratch operand']
  %s0 = inlined_call_operand.vmem [shape: f32[128,32], index: 0, kind: input, shape index: {}]
  %s1 = inlined_call_operand.vmem [shape: bf16[128,128], index: 1, kind: input, shape index: {}]
  %s2 = inlined_call_operand.vmem [shape: f32[16,128], index: 2, kind: input, shape index: {}]
  %s3 = inlined_call_operand.vmem [shape: f32[128,128], index: 3, kind: input, shape index: {}]
  %s4 = inlined_call_operand.vmem [shape: f32[1,128], index: 4, kind: input, shape index: {}]
  %s5 = inlined_call_operand.vmem [shape: bf16[8,128], index: 5, kind: output, shape index: {}]
  %s6 = sld [smem:[#allocation0]]
  $region30: #{kim_cnn_forward.1} parent=0
    _
  %s8 = ssub.s32 1, %s6
  %s9 = scalar_select 0, %s8, %s6
  // Predicated region
  $region2: #{kim_cnn_forward.1} parent=0 // pred_check
    _
  $region3: #{kim_cnn_forward.1} parent=0 // pred_check_branch
    %11 = sbr.rel (0) target = $region5
  $region4: #{kim_cnn_forward.1} parent=0 // pred_region
    _
  $region5: #{kim_cnn_forward.1} parent=0 // pred_fallthru
    _
  // Predicated region
  $region6: #{kim_cnn_forward.1} parent=0 // pred_check
    _
  $region7: #{kim_cnn_forward.1} parent=0 // pred_check_branch
    %13 = sbr.rel (0) target = $region9
  $region8: #{kim_cnn_forward.1} parent=0 // pred_region
    _
  $region9: #{kim_cnn_forward.1} parent=0 // pred_fallthru
    _
  // Predicated region
  $region10: #{kim_cnn_forward.1} parent=0 // pred_check
    _
  $region11: #{kim_cnn_forward.1} parent=0 // pred_check_branch
    %15 = sbr.rel (0) target = $region13
  $region12: #{kim_cnn_forward.1} parent=0 // pred_region
    _
  $region13: #{kim_cnn_forward.1} parent=0 // pred_fallthru
    _
  // Predicated region
  $region14: #{kim_cnn_forward.1} parent=0 // pred_check
    _
  $region15: #{kim_cnn_forward.1} parent=0 // pred_check_branch
    %17 = sbr.rel (0) target = $region17
  $region16: #{kim_cnn_forward.1} parent=0 // pred_region
    _
  $region17: #{kim_cnn_forward.1} parent=0 // pred_fallthru
    _
  // Predicated region
  $region18: #{kim_cnn_forward.1} parent=0 // pred_check
    _
  $region19: #{kim_cnn_forward.1} parent=0 // pred_check_branch
    %19 = sbr.rel (0) target = $region21
  $region20: #{kim_cnn_forward.1} parent=0 // pred_region
    _
  $region21: #{kim_cnn_forward.1} parent=0 // pred_fallthru
    _
  %21 = vst [vmem:[#allocation2 + $0x38] sm:$0xf0] 0
  %v22 = vld [vmem:[%s0] sm:$0xff]
  %v23 = vld [vmem:[%s0 + $0x8] sm:$0xff]
  %v24 = vld [vmem:[%s0 + $0x10] sm:$0xff]
  %v25 = vld [vmem:[%s0 + $0x18] sm:$0xff]
  %v26 = vld [vmem:[%s0 + $0x20] sm:$0xff]
  %v27 = vld [vmem:[%s0 + $0x28] sm:$0xff]
  %v28 = vld [vmem:[%s0 + $0x30] sm:$0xff]
  %v29 = vld [vmem:[%s0 + $0x38] sm:$0xff]
  %v30 = vld [vmem:[%s0 + $0x40] sm:$0xff]
  %v31 = vld [vmem:[%s0 + $0x48] sm:$0xff]
  %v32 = vld [vmem:[%s0 + $0x50] sm:$0xff]
  %v33 = vld [vmem:[%s0 + $0x58] sm:$0xff]
  %v34 = vld [vmem:[%s0 + $0x60] sm:$0xff]
  %v35 = vld [vmem:[%s0 + $0x68] sm:$0xff]
  %v36 = vld [vmem:[%s0 + $0x70] sm:$0xff]
  %v37 = vld [vmem:[%s0 + $0x78] sm:$0xff]
  %v38 = vpack.c.bf16 %v23, %v22
  %v39 = vpack.c.bf16 %v25, %v24
  %v40 = vpack.c.bf16 %v27, %v26
  %v41 = vpack.c.bf16 %v29, %v28
  %v42 = vpack.c.bf16 %v31, %v30
  %v43 = vpack.c.bf16 %v33, %v32
  %v44 = vpack.c.bf16 %v35, %v34
  %v45 = vpack.c.bf16 %v37, %v36
  %vm46 = vcmask 261120
  %47 = vst.msk [vmem:[#allocation2] sm:$0xff] %vm46, %v38
  %48 = vst.msk [vmem:[#allocation2 + $0x8] sm:$0xff] %vm46, %v39
  %49 = vst.msk [vmem:[#allocation2 + $0x10] sm:$0xff] %vm46, %v40
  %50 = vst.msk [vmem:[#allocation2 + $0x18] sm:$0xff] %vm46, %v41
  %51 = vst.msk [vmem:[#allocation2 + $0x20] sm:$0xff] %vm46, %v42
  %52 = vst.msk [vmem:[#allocation2 + $0x28] sm:$0xff] %vm46, %v43
  %53 = vst.msk [vmem:[#allocation2 + $0x30] sm:$0xff] %vm46, %v44
  %54 = vst.msk [vmem:[#allocation2 + $0x38] sm:$0xff] %vm46, %v45
  %v55 = vld [vmem:[%s0 + $0x1] sm:$0xff]
  %v56 = vld [vmem:[%s0 + $0x9] sm:$0xff]
  %v57 = vld [vmem:[%s0 + $0x11] sm:$0xff]
  %v58 = vld [vmem:[%s0 + $0x19] sm:$0xff]
  %v59 = vld [vmem:[%s0 + $0x21] sm:$0xff]
  %v60 = vld [vmem:[%s0 + $0x29] sm:$0xff]
  %v61 = vld [vmem:[%s0 + $0x31] sm:$0xff]
  %v62 = vld [vmem:[%s0 + $0x39] sm:$0xff]
  %v63 = vld [vmem:[%s0 + $0x41] sm:$0xff]
  %v64 = vld [vmem:[%s0 + $0x49] sm:$0xff]
  %v65 = vld [vmem:[%s0 + $0x51] sm:$0xff]
  %v66 = vld [vmem:[%s0 + $0x59] sm:$0xff]
  %v67 = vld [vmem:[%s0 + $0x61] sm:$0xff]
  %v68 = vld [vmem:[%s0 + $0x69] sm:$0xff]
  %v69 = vld [vmem:[%s0 + $0x71] sm:$0xff]
  %v70 = vld [vmem:[%s0 + $0x79] sm:$0x7f]
  %v71 = vpack.c.bf16 %v56, %v55
  %v72 = vpack.c.bf16 %v58, %v57
  %v73 = vpack.c.bf16 %v60, %v59
  %v74 = vpack.c.bf16 %v62, %v61
  %v75 = vpack.c.bf16 %v64, %v63
  %v76 = vpack.c.bf16 %v66, %v65
  %v77 = vpack.c.bf16 %v68, %v67
  %v78 = vpack.c.bf16 %v70, %v69
  %87 = vrot.lane.b32.xlu0 %v71, 32
  %v88 = vpop.permute.xlu0 %87
  %89 = vrot.lane.b32.xlu0 %v72, 32
  %v90 = vpop.permute.xlu0 %89
  %91 = vrot.lane.b32.xlu0 %v73, 32
  %v92 = vpop.permute.xlu0 %91
  %93 = vrot.lane.b32.xlu0 %v74, 32
  %v94 = vpop.permute.xlu0 %93
  %95 = vrot.lane.b32.xlu0 %v75, 32
  %v96 = vpop.permute.xlu0 %95
  %97 = vrot.lane.b32.xlu0 %v76, 32
  %v98 = vpop.permute.xlu0 %97
  %99 = vrot.lane.b32.xlu0 %v77, 32
  %v100 = vpop.permute.xlu0 %99
  %101 = vrot.lane.b32.xlu0 %v78, 32
  %v102 = vpop.permute.xlu0 %101
  %vm111 = vcmask 523520
  %112 = vst.msk [vmem:[#allocation2] sm:$0xff] %vm111, %v88
  %113 = vst.msk [vmem:[#allocation2 + $0x8] sm:$0xff] %vm111, %v90
  %114 = vst.msk [vmem:[#allocation2 + $0x10] sm:$0xff] %vm111, %v92
  %115 = vst.msk [vmem:[#allocation2 + $0x18] sm:$0xff] %vm111, %v94
  %116 = vst.msk [vmem:[#allocation2 + $0x20] sm:$0xff] %vm111, %v96
  %117 = vst.msk [vmem:[#allocation2 + $0x28] sm:$0xff] %vm111, %v98
  %118 = vst.msk [vmem:[#allocation2 + $0x30] sm:$0xff] %vm111, %v100
  %vm119 = vcmask 523520
  %vm120 = vsmask.f32 7424
  %vm121 = vmand %vm119, %vm120
  %v122 = vld [vmem:[#allocation2 + $0x38] sm:$0xff]
  %v123 = vsel %vm121, %v102, %v122
  %124 = vst [vmem:[#allocation2 + $0x38] sm:$0xff] %v123
  %v125 = vld [vmem:[%s0 + $0x2] sm:$0xff]
  %v126 = vld [vmem:[%s0 + $0xa] sm:$0xff]
  %v127 = vld [vmem:[%s0 + $0x12] sm:$0xff]
  %v128 = vld [vmem:[%s0 + $0x1a] sm:$0xff]
  %v129 = vld [vmem:[%s0 + $0x22] sm:$0xff]
  %v130 = vld [vmem:[%s0 + $0x2a] sm:$0xff]
  %v131 = vld [vmem:[%s0 + $0x32] sm:$0xff]
  %v132 = vld [vmem:[%s0 + $0x3a] sm:$0xff]
  %v133 = vld [vmem:[%s0 + $0x42] sm:$0xff]
  %v134 = vld [vmem:[%s0 + $0x4a] sm:$0xff]
  %v135 = vld [vmem:[%s0 + $0x52] sm:$0xff]
  %v136 = vld [vmem:[%s0 + $0x5a] sm:$0xff]
  %v137 = vld [vmem:[%s0 + $0x62] sm:$0xff]
  %v138 = vld [vmem:[%s0 + $0x6a] sm:$0xff]
  %v139 = vld [vmem:[%s0 + $0x72] sm:$0xff]
  %v140 = vld [vmem:[%s0 + $0x7a] sm:$0x3f]
  %v141 = vpack.c.bf16 %v126, %v125
  %v142 = vpack.c.bf16 %v128, %v127
  %v143 = vpack.c.bf16 %v130, %v129
  %v144 = vpack.c.bf16 %v132, %v131
  %v145 = vpack.c.bf16 %v134, %v133
  %v146 = vpack.c.bf16 %v136, %v135
  %v147 = vpack.c.bf16 %v138, %v137
  %v148 = vpack.c.bf16 %v140, %v139
  %157 = vrot.lane.b32.xlu0 %v141, 64
  %v158 = vpop.permute.xlu0 %157
  %159 = vrot.lane.b32.xlu0 %v142, 64
  %v160 = vpop.permute.xlu0 %159
  %161 = vrot.lane.b32.xlu0 %v143, 64
  %v162 = vpop.permute.xlu0 %161
  %163 = vrot.lane.b32.xlu0 %v144, 64
  %v164 = vpop.permute.xlu0 %163
  %165 = vrot.lane.b32.xlu0 %v145, 64
  %v166 = vpop.permute.xlu0 %165
  %167 = vrot.lane.b32.xlu0 %v146, 64
  %v168 = vpop.permute.xlu0 %167
  %169 = vrot.lane.b32.xlu0 %v147, 64
  %v170 = vpop.permute.xlu0 %169
  %171 = vrot.lane.b32.xlu0 %v148, 64
  %v172 = vpop.permute.xlu0 %171
  %vm181 = vcmask 785920
  %182 = vst.msk [vmem:[#allocation2] sm:$0xff] %vm181, %v158
  %183 = vst.msk [vmem:[#allocation2 + $0x8] sm:$0xff] %vm181, %v160
  %184 = vst.msk [vmem:[#allocation2 + $0x10] sm:$0xff] %vm181, %v162
  %185 = vst.msk [vmem:[#allocation2 + $0x18] sm:$0xff] %vm181, %v164
  %186 = vst.msk [vmem:[#allocation2 + $0x20] sm:$0xff] %vm181, %v166
  %187 = vst.msk [vmem:[#allocation2 + $0x28] sm:$0xff] %vm181, %v168
  %188 = vst.msk [vmem:[#allocation2 + $0x30] sm:$0xff] %vm181, %v170
  %vm189 = vcmask 784896
  %190 = vst.msk [vmem:[#allocation2 + $0x38] sm:$0x7f] %vm189, %v172
  %v191 = vld [vmem:[%s0 + $0x3] sm:$0xff]
  %v192 = vld [vmem:[%s0 + $0xb] sm:$0xff]
  %v193 = vld [vmem:[%s0 + $0x13] sm:$0xff]
  %v194 = vld [vmem:[%s0 + $0x1b] sm:$0xff]
  %v195 = vld [vmem:[%s0 + $0x23] sm:$0xff]
  %v196 = vld [vmem:[%s0 + $0x2b] sm:$0xff]
  %v197 = vld [vmem:[%s0 + $0x33] sm:$0xff]
  %v198 = vld [vmem:[%s0 + $0x3b] sm:$0xff]
  %v199 = vld [vmem:[%s0 + $0x43] sm:$0xff]
  %v200 = vld [vmem:[%s0 + $0x4b] sm:$0xff]
  %v201 = vld [vmem:[%s0 + $0x53] sm:$0xff]
  %v202 = vld [vmem:[%s0 + $0x5b] sm:$0xff]
  %v203 = vld [vmem:[%s0 + $0x63] sm:$0xff]
  %v204 = vld [vmem:[%s0 + $0x6b] sm:$0xff]
  %v205 = vld [vmem:[%s0 + $0x73] sm:$0xff]
  %v206 = vld [vmem:[%s0 + $0x7b] sm:$0x1f]
  %v207 = vpack.c.bf16 %v192, %v191
  %v208 = vpack.c.bf16 %v194, %v193
  %v209 = vpack.c.bf16 %v196, %v195
  %v210 = vpack.c.bf16 %v198, %v197
  %v211 = vpack.c.bf16 %v200, %v199
  %v212 = vpack.c.bf16 %v202, %v201
  %v213 = vpack.c.bf16 %v204, %v203
  %v214 = vpack.c.bf16 %v206, %v205
  %223 = vrot.lane.b32.xlu0 %v207, 96
  %v224 = vpop.permute.xlu0 %223
  %225 = vrot.lane.b32.xlu0 %v208, 96
  %v226 = vpop.permute.xlu0 %225
  %227 = vrot.lane.b32.xlu0 %v209, 96
  %v228 = vpop.permute.xlu0 %227
  %229 = vrot.lane.b32.xlu0 %v210, 96
  %v230 = vpop.permute.xlu0 %229
  %231 = vrot.lane.b32.xlu0 %v211, 96
  %v232 = vpop.permute.xlu0 %231
  %233 = vrot.lane.b32.xlu0 %v212, 96
  %v234 = vpop.permute.xlu0 %233
  %235 = vrot.lane.b32.xlu0 %v213, 96
  %v236 = vpop.permute.xlu0 %235
  %237 = vrot.lane.b32.xlu0 %v214, 96
  %v238 = vpop.permute.xlu0 %237
  %vm247 = vcmask 1048320
  %248 = vst.msk [vmem:[#allocation2] sm:$0xff] %vm247, %v224
  %249 = vst.msk [vmem:[#allocation2 + $0x8] sm:$0xff] %vm247, %v226
  %250 = vst.msk [vmem:[#allocation2 + $0x10] sm:$0xff] %vm247, %v228
  %251 = vst.msk [vmem:[#allocation2 + $0x18] sm:$0xff] %vm247, %v230
  %252 = vst.msk [vmem:[#allocation2 + $0x20] sm:$0xff] %vm247, %v232
  %253 = vst.msk [vmem:[#allocation2 + $0x28] sm:$0xff] %vm247, %v234
  %254 = vst.msk [vmem:[#allocation2 + $0x30] sm:$0xff] %vm247, %v236
  %vm255 = vcmask 1047296
  %vm256 = vsmask.f32 6400
  %vm257 = vmand %vm255, %vm256
  %v258 = vld [vmem:[#allocation2 + $0x38] sm:$0x7f]
  %v259 = vsel %vm257, %v238, %v258
  %260 = vst [vmem:[#allocation2 + $0x38] sm:$0x7f] %v259
  %v261 = vld [vmem:[#allocation2] sm:$0xff]
  %v262 = vld [vmem:[#allocation2 + $0x8] sm:$0xff]
  %v263 = vld [vmem:[#allocation2 + $0x10] sm:$0xff]
  %v264 = vld [vmem:[#allocation2 + $0x18] sm:$0xff]
  %v265 = vld [vmem:[#allocation2 + $0x20] sm:$0xff]
  %v266 = vld [vmem:[#allocation2 + $0x28] sm:$0xff]
  %v267 = vld [vmem:[#allocation2 + $0x30] sm:$0xff]
  %v268 = vld [vmem:[#allocation2 + $0x38] sm:$0xff]
  %v269 = vld [vmem:[%s1] sm:$0xf]
  %v270 = vld [vmem:[%s1 + $0x4] sm:$0xf]
  %v271 = vld [vmem:[%s1 + $0x8] sm:$0xf]
  %v272 = vld [vmem:[%s1 + $0xc] sm:$0xf]
  %v273 = vld [vmem:[%s1 + $0x10] sm:$0xf]
  %v274 = vld [vmem:[%s1 + $0x14] sm:$0xf]
  %v275 = vld [vmem:[%s1 + $0x18] sm:$0xf]
  %v276 = vld [vmem:[%s1 + $0x1c] sm:$0xf]
  %v277 = vld [vmem:[%s1 + $0x20] sm:$0xf]
  %v278 = vld [vmem:[%s1 + $0x24] sm:$0xf]
  %v279 = vld [vmem:[%s1 + $0x28] sm:$0xf]
  %v280 = vld [vmem:[%s1 + $0x2c] sm:$0xf]
  %v281 = vld [vmem:[%s1 + $0x30] sm:$0xf]
  %v282 = vld [vmem:[%s1 + $0x34] sm:$0xf]
  %v283 = vld [vmem:[%s1 + $0x38] sm:$0xf]
  %v284 = vld [vmem:[%s1 + $0x3c] sm:$0xf]
  %v301 = vunpack.c.l.b16 %v269
  %v302 = vunpack.c.l.b16 %v270
  %v303 = vunpack.c.l.b16 %v271
  %v304 = vunpack.c.l.b16 %v272
  %v305 = vunpack.c.l.b16 %v273
  %v306 = vunpack.c.l.b16 %v274
  %v307 = vunpack.c.l.b16 %v275
  %v308 = vunpack.c.l.b16 %v276
  %v309 = vunpack.c.l.b16 %v277
  %v310 = vunpack.c.l.b16 %v278
  %v311 = vunpack.c.l.b16 %v279
  %v312 = vunpack.c.l.b16 %v280
  %v313 = vunpack.c.l.b16 %v281
  %v314 = vunpack.c.l.b16 %v282
  %v315 = vunpack.c.l.b16 %v283
  %v316 = vunpack.c.l.b16 %v284
  %v317 = vpack.c.b16 %v302, %v301
  %v318 = vpack.c.b16 %v304, %v303
  %v319 = vpack.c.b16 %v306, %v305
  %v320 = vpack.c.b16 %v308, %v307
  %v321 = vpack.c.b16 %v310, %v309
  %v322 = vpack.c.b16 %v312, %v311
  %v323 = vpack.c.b16 %v314, %v313
  %v324 = vpack.c.b16 %v316, %v315
  %333 = vmatprep.subr.bf16.mxu0 0
  %334 = vmatpush1.bf16.msra.mxu0 %v317
  %335 = vmatprep.subr.bf16.mxu0 0
  %336 = vmatpush1.bf16.msra.mxu0 %v318
  %337 = vmatprep.subr.bf16.mxu0 0
  %338 = vmatpush1.bf16.msra.mxu0 %v319
  %339 = vmatprep.subr.bf16.mxu0 0
  %340 = vmatpush1.bf16.msra.mxu0 %v320
  %341 = vmatprep.subr.bf16.mxu0 0
  %342 = vmatpush1.bf16.msra.mxu0 %v321
  %343 = vmatprep.subr.bf16.mxu0 0
  %344 = vmatpush1.bf16.msra.mxu0 %v322
  %345 = vmatprep.subr.bf16.mxu0 0
  %346 = vmatpush1.bf16.msra.mxu0 %v323
  %347 = vmatprep.subr.bf16.mxu0 0
  %348 = vmatpush1.bf16.msra.mxu0 %v324
  %349 = vmatprep.subr.bf16.mxu0 0
  %350 = vmatpush1.bf16.msra.mxu0 0
  %351 = vmatprep.subr.bf16.mxu0 0
  %352 = vmatpush1.bf16.msra.mxu0 0
  %353 = vmatprep.subr.bf16.mxu0 0
  %354 = vmatpush1.bf16.msra.mxu0 0
  %355 = vmatprep.subr.bf16.mxu0 0
  %356 = vmatpush1.bf16.msra.mxu0 0
  %357 = vmatprep.subr.bf16.mxu0 0
  %358 = vmatpush1.bf16.msra.mxu0 0
  %359 = vmatprep.subr.bf16.mxu0 0
  %360 = vmatpush1.bf16.msra.mxu0 0
  %361 = vmatprep.subr.bf16.mxu0 0
  %362 = vmatpush1.bf16.msra.mxu0 0
  %363 = vmatprep.subr.bf16.mxu0 0
  %364 = vmatpush1.bf16.msra.mxu0 0
  %365 = vmatprep.mubr.bf16.mxu0 0
  %366 = vmatmul.mubr.bf16.gmra.mrb[0].mxu0 %v261
  %v367 = vpop.f32.mrb[0].mxu0
  %v368 = vadd.f32 0.0, %v367
  %v369 = vpop.f32.mrb[0].mxu0
  %v370 = vpop.f32.mrb[0].mxu0
  %v371 = vadd.f32 0.0, %v370
  %v372 = vpop.f32.mrb[0].mxu0
  %373 = vmatprep.mubr.bf16.mxu0 0
  %374 = vmatmul.mubr.bf16.gmra.mrb[0].mxu0 %v262
  %v375 = vpop.f32.mrb[0].mxu0
  %v376 = vadd.f32 0.0, %v375
  %v377 = vpop.f32.mrb[0].mxu0
  %v378 = vpop.f32.mrb[0].mxu0
  %v379 = vadd.f32 0.0, %v378
  %v380 = vpop.f32.mrb[0].mxu0
  %381 = vmatprep.mubr.bf16.mxu0 0
  %382 = vmatmul.mubr.bf16.gmra.mrb[0].mxu0 %v263
  %v383 = vpop.f32.mrb[0].mxu0
  %v384 = vadd.f32 0.0, %v383
  %v385 = vpop.f32.mrb[0].mxu0
  %v386 = vpop.f32.mrb[0].mxu0
  %v387 = vadd.f32 0.0, %v386
  %v388 = vpop.f32.mrb[0].mxu0
  %389 = vmatprep.mubr.bf16.mxu0 0
  %390 = vmatmul.mubr.bf16.gmra.mrb[0].mxu0 %v264
  %v391 = vpop.f32.mrb[0].mxu0
  %v392 = vadd.f32 0.0, %v391
  %v393 = vpop.f32.mrb[0].mxu0
  %v394 = vpop.f32.mrb[0].mxu0
  %v395 = vadd.f32 0.0, %v394
  %v396 = vpop.f32.mrb[0].mxu0
  %397 = vmatprep.mubr.bf16.mxu0 0
  %398 = vmatmul.mubr.bf16.gmra.mrb[0].mxu0 %v265
  %v399 = vpop.f32.mrb[0].mxu0
  %v400 = vadd.f32 0.0, %v399
  %v401 = vpop.f32.mrb[0].mxu0
  %v402 = vpop.f32.mrb[0].mxu0
  %v403 = vadd.f32 0.0, %v402
  %v404 = vpop.f32.mrb[0].mxu0
  %405 = vmatprep.mubr.bf16.mxu0 0
  %406 = vmatmul.mubr.bf16.gmra.mrb[0].mxu0 %v266
  %v407 = vpop.f32.mrb[0].mxu0
  %v408 = vadd.f32 0.0, %v407
  %v409 = vpop.f32.mrb[0].mxu0
  %v410 = vpop.f32.mrb[0].mxu0
  %v411 = vadd.f32 0.0, %v410
  %v412 = vpop.f32.mrb[0].mxu0
  %413 = vmatprep.mubr.bf16.mxu0 0
  %414 = vmatmul.mubr.bf16.gmra.mrb[0].mxu0 %v267
  %v415 = vpop.f32.mrb[0].mxu0
  %v416 = vadd.f32 0.0, %v415
  %v417 = vpop.f32.mrb[0].mxu0
  %v418 = vpop.f32.mrb[0].mxu0
  %v419 = vadd.f32 0.0, %v418
  %v420 = vpop.f32.mrb[0].mxu0
  %421 = vmatprep.mubr.bf16.mxu0 0
  %422 = vmatmul.mubr.bf16.gmra.mrb[0].mxu0 %v268
  %v423 = vpop.f32.mrb[0].mxu0
  %v424 = vadd.f32 0.0, %v423
  %v425 = vpop.f32.mrb[0].mxu0
  %v426 = vpop.f32.mrb[0].mxu0
  %v427 = vadd.f32 0.0, %v426
  %v428 = vpop.f32.mrb[0].mxu0
  %429 = vdwg.mxu0
  %v430 = vld [vmem:[%s2] sm:$0xff]
  %v431 = vld [vmem:[%s2 + $0x8] sm:$0xff]
  %v432 = vadd.f32 %v368, %v430
  %v433 = vadd.f32 %v371, %v431
  %v434 = vadd.f32 %v376, %v430
  %v435 = vadd.f32 %v379, %v431
  %v436 = vadd.f32 %v384, %v430
  %v437 = vadd.f32 %v387, %v431
  %v438 = vadd.f32 %v392, %v430
  %v439 = vadd.f32 %v395, %v431
  %v440 = vadd.f32 %v400, %v430
  %v441 = vadd.f32 %v403, %v431
  %v442 = vadd.f32 %v408, %v430
  %v443 = vadd.f32 %v411, %v431
  %v444 = vadd.f32 %v416, %v430
  %v445 = vadd.f32 %v419, %v431
  %v446 = vadd.f32 %v424, %v430
  %v447 = vadd.f32 %v427, %v431
  %v448 = vmax.f32 %v432, 0.0
  %v449 = vmax.f32 %v433, 0.0
  %v450 = vmax.f32 %v434, 0.0
  %v451 = vmax.f32 %v435, 0.0
  %v452 = vmax.f32 %v436, 0.0
  %v453 = vmax.f32 %v437, 0.0
  %v454 = vmax.f32 %v438, 0.0
  %v455 = vmax.f32 %v439, 0.0
  %v456 = vmax.f32 %v440, 0.0
  %v457 = vmax.f32 %v441, 0.0
  %v458 = vmax.f32 %v442, 0.0
  %v459 = vmax.f32 %v443, 0.0
  %v460 = vmax.f32 %v444, 0.0
  %v461 = vmax.f32 %v445, 0.0
  %v462 = vmax.f32 %v446, 0.0
  %v463 = vmax.f32 %v447, 0.0
  %v464 = vmax.f32 %v448, %v449
  %v465 = vrot.slane %v464, 4
  %v466 = vmax.f32 %v464, %v465
  %v467 = vrot.slane %v466, 2
  %v468 = vmax.f32 %v466, %v467
  %v469 = vrot.slane %v468, 1
  %v470 = vmax.f32 %v468, %v469
  %v471 = vmax.f32 %v450, %v451
  %v472 = vrot.slane %v471, 4
  %v473 = vmax.f32 %v471, %v472
  %v474 = vrot.slane %v473, 2
  %v475 = vmax.f32 %v473, %v474
  %v476 = vrot.slane %v475, 1
  %v477 = vmax.f32 %v475, %v476
  %v478 = vmax.f32 %v452, %v453
  %v479 = vrot.slane %v478, 4
  %v480 = vmax.f32 %v478, %v479
  %v481 = vrot.slane %v480, 2
  %v482 = vmax.f32 %v480, %v481
  %v483 = vrot.slane %v482, 1
  %v484 = vmax.f32 %v482, %v483
  %v485 = vmax.f32 %v454, %v455
  %v486 = vrot.slane %v485, 4
  %v487 = vmax.f32 %v485, %v486
  %v488 = vrot.slane %v487, 2
  %v489 = vmax.f32 %v487, %v488
  %v490 = vrot.slane %v489, 1
  %v491 = vmax.f32 %v489, %v490
  %v492 = vmax.f32 %v456, %v457
  %v493 = vrot.slane %v492, 4
  %v494 = vmax.f32 %v492, %v493
  %v495 = vrot.slane %v494, 2
  %v496 = vmax.f32 %v494, %v495
  %v497 = vrot.slane %v496, 1
  %v498 = vmax.f32 %v496, %v497
  %v499 = vmax.f32 %v458, %v459
  %v500 = vrot.slane %v499, 4
  %v501 = vmax.f32 %v499, %v500
  %v502 = vrot.slane %v501, 2
  %v503 = vmax.f32 %v501, %v502
  %v504 = vrot.slane %v503, 1
  %v505 = vmax.f32 %v503, %v504
  %v506 = vmax.f32 %v460, %v461
  %v507 = vrot.slane %v506, 4
  %v508 = vmax.f32 %v506, %v507
  %v509 = vrot.slane %v508, 2
  %v510 = vmax.f32 %v508, %v509
  %v511 = vrot.slane %v510, 1
  %v512 = vmax.f32 %v510, %v511
  %v513 = vmax.f32 %v462, %v463
  %v514 = vrot.slane %v513, 4
  %v515 = vmax.f32 %v513, %v514
  %v516 = vrot.slane %v515, 2
  %v517 = vmax.f32 %v515, %v516
  %v518 = vrot.slane %v517, 1
  %v519 = vmax.f32 %v517, %v518
  %v520 = vld [vmem:[%s3] sm:$0xff]
  %v521 = vld [vmem:[%s3 + $0x8] sm:$0xff]
  %v522 = vld [vmem:[%s3 + $0x10] sm:$0xff]
  %v523 = vld [vmem:[%s3 + $0x18] sm:$0xff]
  %v524 = vld [vmem:[%s3 + $0x20] sm:$0xff]
  %v525 = vld [vmem:[%s3 + $0x28] sm:$0xff]
  %v526 = vld [vmem:[%s3 + $0x30] sm:$0xff]
  %v527 = vld [vmem:[%s3 + $0x38] sm:$0xff]
  %v528 = vld [vmem:[%s3 + $0x40] sm:$0xff]
  %v529 = vld [vmem:[%s3 + $0x48] sm:$0xff]
  %v530 = vld [vmem:[%s3 + $0x50] sm:$0xff]
  %v531 = vld [vmem:[%s3 + $0x58] sm:$0xff]
  %v532 = vld [vmem:[%s3 + $0x60] sm:$0xff]
  %v533 = vld [vmem:[%s3 + $0x68] sm:$0xff]
  %v534 = vld [vmem:[%s3 + $0x70] sm:$0xff]
  %v535 = vld [vmem:[%s3 + $0x78] sm:$0xff]
  %v536 = vld [vmem:[%s4] sm:$0x1]
  %v538 = vlaneseq
  %v539 = vshrl.u32 %v538, 7
  %v540 = vsub.s32 0, %v539
  %v541 = vrot.slane %v536, %v540
  %vm551 = vcmask 1041409
  %v552 = vsel %vm551, %v477, %v470
  %vm553 = vcmask 1042434
  %v554 = vsel %vm553, %v484, %v552
  %vm555 = vcmask 1043459
  %v556 = vsel %vm555, %v491, %v554
  %vm557 = vcmask 1044484
  %v558 = vsel %vm557, %v498, %v556
  %vm559 = vcmask 1045509
  %v560 = vsel %vm559, %v505, %v558
  %vm561 = vcmask 1046534
  %v562 = vsel %vm561, %v512, %v560
  %vm563 = vcmask 1047559
  %v564 = vsel %vm563, %v519, %v562
  %566 = vmatprep.subr.mxu0 0.0
  %567 = vmatpush1.msra.mxu0 %v520
  %568 = vmatprep.subr.mxu0 0.0
  %569 = vmatpush1.msra.mxu0 %v521
  %570 = vmatprep.subr.mxu0 0.0
  %571 = vmatpush1.msra.mxu0 %v522
  %572 = vmatprep.subr.mxu0 0.0
  %573 = vmatpush1.msra.mxu0 %v523
  %574 = vmatprep.subr.mxu0 0.0
  %575 = vmatpush1.msra.mxu0 %v524
  %576 = vmatprep.subr.mxu0 0.0
  %577 = vmatpush1.msra.mxu0 %v525
  %578 = vmatprep.subr.mxu0 0.0
  %579 = vmatpush1.msra.mxu0 %v526
  %580 = vmatprep.subr.mxu0 0.0
  %581 = vmatpush1.msra.mxu0 %v527
  %582 = vmatprep.subr.mxu0 0.0
  %583 = vmatpush1.msra.mxu0 %v528
  %584 = vmatprep.subr.mxu0 0.0
  %585 = vmatpush1.msra.mxu0 %v529
  %586 = vmatprep.subr.mxu0 0.0
  %587 = vmatpush1.msra.mxu0 %v530
  %588 = vmatprep.subr.mxu0 0.0
  %589 = vmatpush1.msra.mxu0 %v531
  %590 = vmatprep.subr.mxu0 0.0
  %591 = vmatpush1.msra.mxu0 %v532
  %592 = vmatprep.subr.mxu0 0.0
  %593 = vmatpush1.msra.mxu0 %v533
  %594 = vmatprep.subr.mxu0 0.0
  %595 = vmatpush1.msra.mxu0 %v534
  %596 = vmatprep.subr.mxu0 0.0
  %597 = vmatpush1.msra.mxu0 %v535
  %598 = vmatprep.subr.mxu0 0.0
  %599 = vmatpush1.msra.mxu0 0.0
  %600 = vmatprep.subr.mxu0 0.0
  %601 = vmatpush1.msra.mxu0 0.0
  %602 = vmatprep.subr.mxu0 0.0
  %603 = vmatpush1.msra.mxu0 0.0
  %604 = vmatprep.subr.mxu0 0.0
  %605 = vmatpush1.msra.mxu0 0.0
  %606 = vmatprep.subr.mxu0 0.0
  %607 = vmatpush1.msra.mxu0 0.0
  %608 = vmatprep.subr.mxu0 0.0
  %609 = vmatpush1.msra.mxu0 0.0
  %610 = vmatprep.subr.mxu0 0.0
  %611 = vmatpush1.msra.mxu0 0.0
  %612 = vmatprep.subr.mxu0 0.0
  %613 = vmatpush1.msra.mxu0 0.0
  %614 = vmatprep.subr.mxu0 0.0
  %615 = vmatpush1.msra.mxu0 0.0
  %616 = vmatprep.subr.mxu0 0.0
  %617 = vmatpush1.msra.mxu0 0.0
  %618 = vmatprep.subr.mxu0 0.0
  %619 = vmatpush1.msra.mxu0 0.0
  %620 = vmatprep.subr.mxu0 0.0
  %621 = vmatpush1.msra.mxu0 0.0
  %622 = vmatprep.subr.mxu0 0.0
  %623 = vmatpush1.msra.mxu0 0.0
  %624 = vmatprep.subr.mxu0 0.0
  %625 = vmatpush1.msra.mxu0 0.0
  %626 = vmatprep.subr.mxu0 0.0
  %627 = vmatpush1.msra.mxu0 0.0
  %628 = vmatprep.subr.mxu0 0.0
  %629 = vmatpush1.msra.mxu0 0.0
  %630 = vmatprep.mubr.f32.mxu0 0.0
  %631 = vmatmul.mubr.f32.gmra.mrb[0].mxu0 %v564
  %v632 = vpop.f32.mrb[0].mxu0
  %v633 = vadd.f32 %v541, %v632
  %v634 = vpop.f32.mrb[0].mxu0
  %635 = vdwg.mxu0
  %v636 = vxor.u32 %v633, 2147483648
  %v637 = vmul.f32 %v636, 1.442695
  %v638 = vpow.pop %v637
  %v639 = vadd.f32 %v638, 1.0
  %v640 = vrcp.pop %v639
  %v641 = vmul.f32 1.0, %v640
  %v642 = vpack.c.bf16 %v641, %v641
  %643 = vst [vmem:[%s5] sm:$0xf] %v642
  // Predicated region
  $region22: #{kim_cnn_forward.1} parent=0 // pred_check
    _
  $region23: #{kim_cnn_forward.1} parent=0 // pred_check_branch
    %645 = sbr.rel (0) target = $region25
  $region24: #{kim_cnn_forward.1} parent=0 // pred_region
    _
  $region25: #{kim_cnn_forward.1} parent=0 // pred_fallthru
    _
  // Predicated region
  $region26: #{kim_cnn_forward.1} parent=0 // pred_check
    _
  $region27: #{kim_cnn_forward.1} parent=0 // pred_check_branch
    %647 = sbr.rel (0) target = $region29
  $region28: #{kim_cnn_forward.1} parent=0 // pred_region
    _
  $region29: #{kim_cnn_forward.1} parent=0 // pred_fallthru
    _

</llo_original>
